<compile_context>
chip_gen: v6e
topology: v6e:2x2x1
jax: 0.10.0
libtpu: 0.0.40
codegen_flags: <defaults>
</compile_context>

<pallas_src>
import jax
import jax.numpy as jnp
from jax.experimental import pallas as pl
from jax.experimental.pallas import tpu as pltpu

# ---- small shapes consistent with the module ---------------------------------
B = 2          # batch
D_IN = 32      # d_input
N_CLASS = 16   # n_class


def classification_head_kernel(x_ref, p_ref, o_ref):
    # All refs are full arrays resident in VMEM (no grid, no pipelining).
    d_in = x_ref.shape[1]
    n_class = o_ref.shape[1]

    x = x_ref[...]                                          # (B, d_in)

    # Static slices of the packed parameter slab (compile-time offsets).
    w1 = p_ref[0:d_in, 0:d_in]                              # (d_in, d_in)
    w2 = p_ref[0:d_in, d_in:d_in + n_class]                 # (d_in, n_class)
    b1 = p_ref[d_in:d_in + 1, 0:d_in]                       # (1, d_in)  - sublane broadcast
    b2 = p_ref[d_in:d_in + 1, d_in:d_in + n_class]          # (1, n_class)

    h = jnp.dot(x, w1, preferred_element_type=jnp.float32) + b1
    h = jnp.maximum(h, 0.0)                                 # ReLU
    y = jnp.dot(h, w2, preferred_element_type=jnp.float32) + b2
    o_ref[...] = y.astype(o_ref.dtype)                      # one (B, n_class) store


def pack_params(w1_t, b1, w2_t, b2):
    """Pack transposed weights + biases into one (d_in+1, d_in+n_class) f32 slab.

    w1_t: (d_in, d_in)   -- PyTorch linear1.weight.T
    b1  : (d_in,)
    w2_t: (d_in, n_class)-- PyTorch linear2.weight.T
    b2  : (n_class,)
    """
    d_in = w1_t.shape[0]
    n_class = w2_t.shape[1]
    slab = jnp.zeros((d_in + 1, d_in + n_class), jnp.float32)
    slab = slab.at[:d_in, :d_in].set(w1_t.astype(jnp.float32))
    slab = slab.at[:d_in, d_in:].set(w2_t.astype(jnp.float32))
    slab = slab.at[d_in, :d_in].set(b1.reshape(-1).astype(jnp.float32))
    slab = slab.at[d_in, d_in:].set(b2.reshape(-1).astype(jnp.float32))
    return slab


@jax.jit
def classification_head(x, params):
    """x: (B, d_input); params: packed (d_input+1, d_input+n_class) slab -> (B, n_class)."""
    b, d_in = x.shape
    n_class = params.shape[1] - d_in

    # Advisory cost estimate so XLA can schedule/overlap around the custom call.
    flops = 2 * b * d_in * d_in + 2 * b * d_in * n_class
    bytes_accessed = 4 * (x.size + params.size + b * n_class)
    cost = pl.CostEstimate(flops=flops, transcendentals=0,
                           bytes_accessed=bytes_accessed)

    vmem = pl.BlockSpec(memory_space=pltpu.MemorySpace.VMEM)
    return pl.pallas_call(
        classification_head_kernel,
        out_shape=jax.ShapeDtypeStruct((b, n_class), x.dtype),
        in_specs=[vmem, vmem],
        out_specs=vmem,
        cost_estimate=cost,
    )(x, params)
    # TODO(synk): in the full TDMSANet model, fuse this head as the epilogue of
    # the kernel that produces `x` (or leave it to XLA) to remove the extra
    # launch + HBM round-trip entirely.


# ---- pure-JAX reference (for verification) ------------------------------------
def reference(x, w1_t, b1, w2_t, b2):
    h = jax.nn.relu(jnp.dot(x, w1_t) + b1)
    return jnp.dot(h, w2_t) + b2


if __name__ == "__main__":
    key = jax.random.PRNGKey(0)
    kx, k1, k2, k3, k4 = jax.random.split(key, 5)

    x = jax.random.normal(kx, (B, D_IN), jnp.float32)

    # PyTorch nn.Linear stores weight as (out_features, in_features); we work
    # with the transpose (in, out) so the kernel right-multiplies.
    w1_t = jax.random.normal(k1, (D_IN, D_IN), jnp.float32) / jnp.sqrt(D_IN)
    b1 = 0.01 * jax.random.normal(k2, (D_IN,), jnp.float32)
    w2_t = jax.random.normal(k3, (D_IN, N_CLASS), jnp.float32) / jnp.sqrt(D_IN)
    b2 = 0.01 * jax.random.normal(k4, (N_CLASS,), jnp.float32)

    params = pack_params(w1_t, b1, w2_t, b2)

    out = jax.block_until_ready(classification_head(x, params))
    ref = jax.block_until_ready(reference(x, w1_t, b1, w2_t, b2))

    assert out.shape == (B, N_CLASS), out.shape
    assert bool(jnp.all(jnp.isfinite(out))), "non-finite output"
    max_err = float(jnp.max(jnp.abs(out - ref)))
    assert max_err < 1e-2, f"mismatch vs reference: {max_err}"

    print("KERNEL_OK")
</pallas_src>

<mosaic_0001>
module attributes {stable_mosaic.version = 11 : i64} {
  func.func @classification_head_kernel(%arg0: memref<2x32xf32, #tpu.memory_space<vmem>>, %arg1: memref<33x48xf32, #tpu.memory_space<vmem>>, %arg2: memref<2x16xf32, #tpu.memory_space<vmem>>) attributes {dimension_semantics = [], scalar_prefetch = 0 : i64, scratch_operands = 0 : i64, tpu.core_type = #tpu.core_type<tc>} {
    %c0 = arith.constant 0 : index
    %c0_0 = arith.constant 0 : index
    %0 = vector.load %arg0[%c0, %c0_0] : memref<2x32xf32, #tpu.memory_space<vmem>>, vector<2x32xf32>
    %c0_1 = arith.constant 0 : index
    %c0_2 = arith.constant 0 : index
    %1 = vector.load %arg1[%c0_1, %c0_2] : memref<33x48xf32, #tpu.memory_space<vmem>>, vector<32x32xf32>
    %c0_3 = arith.constant 0 : index
    %c32 = arith.constant 32 : index
    %2 = vector.load %arg1[%c0_3, %c32] : memref<33x48xf32, #tpu.memory_space<vmem>>, vector<32x16xf32>
    %c32_4 = arith.constant 32 : index
    %c0_5 = arith.constant 0 : index
    %3 = vector.load %arg1[%c32_4, %c0_5] : memref<33x48xf32, #tpu.memory_space<vmem>>, vector<1x32xf32>
    %c32_6 = arith.constant 32 : index
    %c32_7 = arith.constant 32 : index
    %4 = vector.load %arg1[%c32_6, %c32_7] : memref<33x48xf32, #tpu.memory_space<vmem>>, vector<1x16xf32>
    %cst = arith.constant dense<0.000000e+00> : vector<2x32xf32>
    %5 = tpu.matmul %0, %1, %cst {dimension_numbers = #tpu.dot_dimension_numbers<[1], [0], [0], [1], [0, 0, 1, 1], [], []>} : vector<2x32xf32>, vector<32x32xf32>, vector<2x32xf32> -> vector<2x32xf32>
    %6 = vector.broadcast %3 : vector<1x32xf32> to vector<2x32xf32>
    %7 = arith.addf %5, %6 : vector<2x32xf32>
    %cst_8 = arith.constant 0.000000e+00 : f32
    %8 = vector.broadcast %cst_8 : f32 to vector<2x32xf32>
    %9 = arith.maximumf %7, %8 : vector<2x32xf32>
    %cst_9 = arith.constant dense<0.000000e+00> : vector<2x16xf32>
    %10 = tpu.matmul %9, %2, %cst_9 {dimension_numbers = #tpu.dot_dimension_numbers<[1], [0], [0], [1], [0, 0, 1, 1], [], []>} : vector<2x32xf32>, vector<32x16xf32>, vector<2x16xf32> -> vector<2x16xf32>
    %11 = vector.broadcast %4 : vector<1x16xf32> to vector<2x16xf32>
    %12 = arith.addf %10, %11 : vector<2x16xf32>
    %c0_10 = arith.constant 0 : index
    %c0_11 = arith.constant 0 : index
    %13 = vector.load %arg2[%c0_10, %c0_11] : memref<2x16xf32, #tpu.memory_space<vmem>>, vector<2x16xf32>
    tpu.vector_store %arg2[%c0_10, %c0_11], %12 {strides = array<i32>} : memref<2x16xf32, #tpu.memory_space<vmem>>, vector<2x16xf32>,
    return
  }
}

</mosaic_0001>

<llo_original>
// kernel: classification_head.1
$region0: #{classification_head.1}
  #allocation0 [shape = 'u32[]', space=smem, size = 0x4, offset = 0x4, fixed_abs, tag = 'smem constant byte address 0x4 - core index']
  #allocation1 [shape = 'u32[144,128]{1,0:T(1,128)}', space=vmem, size = 0x12000, scoped, tag = 'internal scratch']
  %s0 = inlined_call_operand.hbm [shape: f32[2,32], index: 0, kind: input, shape index: {}]
  %s1 = inlined_call_operand.hbm [shape: f32[33,48], index: 1, kind: input, shape index: {}]
  %s2 = inlined_call_operand.hbm [shape: f32[2,16], index: 2, kind: output, shape index: {}]
  %s3 = sld [smem:[#allocation0]]
  $region26: #{classification_head.1} parent=0
    _
  %s5 = ssub.s32 1, %s3
  %s6 = scalar_select 0, %s5, %s3
  $region1: #{classification_head.1} parent=0
    #allocation2 [shape = 'u8[1024]{0}', space=vmem, size = 0x400, scoped, tag = 'input window, operand 0, single buffered']
    #allocation3 [shape = 's32[1]{0}', space=sflag, size = 0x4, scoped, tag = 'scoped memory for classification_head.1']
    #allocation4 [shape = 's32[1]{0}', space=sflag, size = 0x4, scoped, tag = 'scoped memory for classification_head.1']
    #allocation5 [shape = 'u8[20480]{0}', space=vmem, size = 0x5000, scoped, tag = 'input window, operand 1, single buffered']
    #allocation6 [shape = 's32[1]{0}', space=sflag, size = 0x4, scoped, tag = 'scoped memory for classification_head.1']
    #allocation7 [shape = 'u8[1024]{0}', space=vmem, size = 0x400, scoped, tag = 'output window, operand 0, single buffered']
    %7 = vsyncpa [#allocation3], 0
    %8 = vsyncpa [#allocation6], 0
    %9 = vsyncpa [#allocation4], 0
    // Predicated region
    $region2: #{classification_head.1} parent=1 // pred_check
      _
    $region3: #{classification_head.1} parent=1 // pred_check_branch
      %11 = sbr.rel (0) target = $region5
    $region4: #{classification_head.1} parent=1 // pred_region
      %s13 = ssub.s32 32, 32
      %14 = vsyncadd [#allocation3], %s13
      %s16 = sshll.u32 [#allocation2], 4
      %s17 = int_to_ptr.vmem [resolvable:$true] %s16
      %19 = dma.hbm_to_vmem [thread:$0]  %s0, 32, %s17, [#allocation3]
    $region5: #{classification_head.1} parent=1 // pred_fallthru
      _
    // Predicated region
    $region6: #{classification_head.1} parent=1 // pred_check
      _
    $region7: #{classification_head.1} parent=1 // pred_check_branch
      %21 = sbr.rel (0) target = $region9
    $region8: #{classification_head.1} parent=1 // pred_region
      %s23 = ssub.s32 640, 640
      %24 = vsyncadd [#allocation6], %s23
      %s25 = sshll.u32 [#allocation5], 4
      %s26 = int_to_ptr.vmem [resolvable:$true] %s25
      %31 = dma.hbm_to_vmem [thread:$0]  %s1, 640, %s26, [#allocation6], 128, 128, 8
    $region9: #{classification_head.1} parent=1 // pred_fallthru
      _
    // Predicated region
    $region10: #{classification_head.1} parent=1 // pred_check
      _
    $region11: #{classification_head.1} parent=1 // pred_check_branch
      %33 = sbr.rel (0) target = $region13
    $region12: #{classification_head.1} parent=1 // pred_region
      %34 = dma.done [#allocation3], 32
    $region13: #{classification_head.1} parent=1 // pred_fallthru
      _
    // Predicated region
    $region14: #{classification_head.1} parent=1 // pred_check
      _
    $region15: #{classification_head.1} parent=1 // pred_check_branch
      %36 = sbr.rel (0) target = $region17
    $region16: #{classification_head.1} parent=1 // pred_region
      %37 = dma.done [#allocation6], 640
    $region17: #{classification_head.1} parent=1 // pred_fallthru
      _
    %v38 = vld [vmem:[#allocation2] sm:$0x3]
    %v39 = vld [vmem:[#allocation5] sm:$0xff]
    %v40 = vld [vmem:[#allocation5 + $0x8] sm:$0xff]
    %v41 = vld [vmem:[#allocation5 + $0x10] sm:$0xff]
    %v42 = vld [vmem:[#allocation5 + $0x18] sm:$0xff]
    %v43 = vld [vmem:[#allocation5 + $0x20] sm:$0x1]
    %v44 = vlaneseq
    %v45 = vshrl.u32 %v44, 7
    %v46 = vsub.s32 0, %v45
    %v47 = vrot.slane %v43, %v46
    %vm48 = vcmask 261120
    %v50 = vsel %vm48, %v38, 0
    %52 = vmatprep.subr.mxu0 0.0
    %53 = vmatpush1.msra.mxu0 0.0
    %54 = vmatprep.subr.mxu0 0.0
    %55 = vmatpush1.msra.mxu0 0.0
    %56 = vmatprep.subr.mxu0 0.0
    %57 = vmatpush1.msra.mxu0 0.0
    %58 = vmatprep.subr.mxu0 0.0
    %59 = vmatpush1.msra.mxu0 0.0
    %60 = vmatprep.subr.mxu0 0.0
    %61 = vmatpush1.msra.mxu0 0.0
    %62 = vmatprep.subr.mxu0 0.0
    %63 = vmatpush1.msra.mxu0 0.0
    %64 = vmatprep.subr.mxu0 0.0
    %65 = vmatpush1.msra.mxu0 0.0
    %66 = vmatprep.subr.mxu0 0.0
    %67 = vmatpush1.msra.mxu0 0.0
    %68 = vmatprep.subr.mxu0 0.0
    %69 = vmatpush1.msra.mxu0 0.0
    %70 = vmatprep.subr.mxu0 0.0
    %71 = vmatpush1.msra.mxu0 0.0
    %72 = vmatprep.subr.mxu0 0.0
    %73 = vmatpush1.msra.mxu0 0.0
    %74 = vmatprep.subr.mxu0 0.0
    %75 = vmatpush1.msra.mxu0 0.0
    %76 = vmatprep.subr.mxu0 0.0
    %77 = vmatpush1.msra.mxu0 %v42
    %78 = vmatprep.subr.mxu0 0.0
    %79 = vmatpush1.msra.mxu0 %v41
    %80 = vmatprep.subr.mxu0 0.0
    %81 = vmatpush1.msra.mxu0 %v40
    %82 = vmatprep.subr.mxu0 0.0
    %83 = vmatpush1.msra.mxu0 %v39
    %84 = vmatprep.subr.mxu0 0.0
    %85 = vmatpush2.msra.mxu0 0.0
    %86 = vmatprep.subr.mxu0 0.0
    %87 = vmatpush2.msra.mxu0 0.0
    %88 = vmatprep.subr.mxu0 0.0
    %89 = vmatpush2.msra.mxu0 0.0
    %90 = vmatprep.subr.mxu0 0.0
    %91 = vmatpush2.msra.mxu0 0.0
    %92 = vmatprep.subr.mxu0 0.0
    %93 = vmatpush2.msra.mxu0 0.0
    %94 = vmatprep.subr.mxu0 0.0
    %95 = vmatpush2.msra.mxu0 0.0
    %96 = vmatprep.subr.mxu0 0.0
    %97 = vmatpush2.msra.mxu0 0.0
    %98 = vmatprep.subr.mxu0 0.0
    %99 = vmatpush2.msra.mxu0 0.0
    %100 = vmatprep.subr.mxu0 0.0
    %101 = vmatpush2.msra.mxu0 0.0
    %102 = vmatprep.subr.mxu0 0.0
    %103 = vmatpush2.msra.mxu0 0.0
    %104 = vmatprep.subr.mxu0 0.0
    %105 = vmatpush2.msra.mxu0 0.0
    %106 = vmatprep.subr.mxu0 0.0
    %107 = vmatpush2.msra.mxu0 0.0
    %108 = vmatprep.subr.mxu0 0.0
    %109 = vmatpush2.msra.mxu0 0.0
    %110 = vmatprep.subr.mxu0 0.0
    %111 = vmatpush2.msra.mxu0 0.0
    %112 = vmatprep.subr.mxu0 0.0
    %113 = vmatpush2.msra.mxu0 0.0
    %114 = vmatprep.subr.mxu0 0.0
    %115 = vmatpush2.msra.mxu0 0.0
    %116 = vmatprep.mubr.f32.mxu0 0.0
    %117 = vmatmul.mubr.f32.gmra.mxu0 %v50
    %v118 = vpop.f32.mrf.mxu0
    %v119 = vadd.f32 %v47, %v118
    %v120 = vpop.f32.mrf.mxu0
    %121 = vdwg.mxu0
    %v122 = vmax.f32 %v119, 0.0
    %127 = vrot.lane.b32.xlu0 %v39, 96
    %v128 = vpop.permute.xlu0 %127
    %129 = vrot.lane.b32.xlu0 %v40, 96
    %v130 = vpop.permute.xlu0 %129
    %131 = vrot.lane.b32.xlu0 %v41, 96
    %v132 = vpop.permute.xlu0 %131
    %133 = vrot.lane.b32.xlu0 %v42, 96
    %v134 = vpop.permute.xlu0 %133
    %140 = vrot.lane.b32.xlu0 %v47, 96
    %v141 = vpop.permute.xlu0 %140
    %v144 = vsel %vm48, %v122, 0
    %146 = vmatprep.subr.mxu0 0.0
    %147 = vmatpush1.msra.mxu0 0.0
    %148 = vmatprep.subr.mxu0 0.0
    %149 = vmatpush1.msra.mxu0 0.0
    %150 = vmatprep.subr.mxu0 0.0
    %151 = vmatpush1.msra.mxu0 0.0
    %152 = vmatprep.subr.mxu0 0.0
    %153 = vmatpush1.msra.mxu0 0.0
    %154 = vmatprep.subr.mxu0 0.0
    %155 = vmatpush1.msra.mxu0 0.0
    %156 = vmatprep.subr.mxu0 0.0
    %157 = vmatpush1.msra.mxu0 0.0
    %158 = vmatprep.subr.mxu0 0.0
    %159 = vmatpush1.msra.mxu0 0.0
    %160 = vmatprep.subr.mxu0 0.0
    %161 = vmatpush1.msra.mxu0 0.0
    %162 = vmatprep.subr.mxu0 0.0
    %163 = vmatpush1.msra.mxu0 0.0
    %164 = vmatprep.subr.mxu0 0.0
    %165 = vmatpush1.msra.mxu0 0.0
    %166 = vmatprep.subr.mxu0 0.0
    %167 = vmatpush1.msra.mxu0 0.0
    %168 = vmatprep.subr.mxu0 0.0
    %169 = vmatpush1.msra.mxu0 0.0
    %170 = vmatprep.subr.mxu0 0.0
    %171 = vmatpush1.msra.mxu0 %v134
    %172 = vmatprep.subr.mxu0 0.0
    %173 = vmatpush1.msra.mxu0 %v132
    %174 = vmatprep.subr.mxu0 0.0
    %175 = vmatpush1.msra.mxu0 %v130
    %176 = vmatprep.subr.mxu0 0.0
    %177 = vmatpush1.msra.mxu0 %v128
    %178 = vmatprep.subr.mxu0 0.0
    %179 = vmatpush2.msra.mxu0 0.0
    %180 = vmatprep.subr.mxu0 0.0
    %181 = vmatpush2.msra.mxu0 0.0
    %182 = vmatprep.subr.mxu0 0.0
    %183 = vmatpush2.msra.mxu0 0.0
    %184 = vmatprep.subr.mxu0 0.0
    %185 = vmatpush2.msra.mxu0 0.0
    %186 = vmatprep.subr.mxu0 0.0
    %187 = vmatpush2.msra.mxu0 0.0
    %188 = vmatprep.subr.mxu0 0.0
    %189 = vmatpush2.msra.mxu0 0.0
    %190 = vmatprep.subr.mxu0 0.0
    %191 = vmatpush2.msra.mxu0 0.0
    %192 = vmatprep.subr.mxu0 0.0
    %193 = vmatpush2.msra.mxu0 0.0
    %194 = vmatprep.subr.mxu0 0.0
    %195 = vmatpush2.msra.mxu0 0.0
    %196 = vmatprep.subr.mxu0 0.0
    %197 = vmatpush2.msra.mxu0 0.0
    %198 = vmatprep.subr.mxu0 0.0
    %199 = vmatpush2.msra.mxu0 0.0
    %200 = vmatprep.subr.mxu0 0.0
    %201 = vmatpush2.msra.mxu0 0.0
    %202 = vmatprep.subr.mxu0 0.0
    %203 = vmatpush2.msra.mxu0 0.0
    %204 = vmatprep.subr.mxu0 0.0
    %205 = vmatpush2.msra.mxu0 0.0
    %206 = vmatprep.subr.mxu0 0.0
    %207 = vmatpush2.msra.mxu0 0.0
    %208 = vmatprep.subr.mxu0 0.0
    %209 = vmatpush2.msra.mxu0 0.0
    %210 = vmatprep.mubr.f32.mxu0 0.0
    %211 = vmatmul.mubr.f32.gmra.mxu0 %v144
    %v212 = vpop.f32.mrf.mxu0
    %v213 = vadd.f32 %v141, %v212
    %v214 = vpop.f32.mrf.mxu0
    %215 = vdwg.mxu0
    %vm216 = vcmask 123904
    %217 = vst.msk [vmem:[#allocation7] sm:$0x3] %vm216, %v213
    // Predicated region
    $region18: #{classification_head.1} parent=1 // pred_check
      _
    $region19: #{classification_head.1} parent=1 // pred_check_branch
      %219 = sbr.rel (0) target = $region21
    $region20: #{classification_head.1} parent=1 // pred_region
      %s221 = ssub.s32 32, 32
      %222 = vsyncadd [#allocation4], %s221
      %s224 = sshll.u32 [#allocation7], 4
      %s225 = int_to_ptr.vmem [resolvable:$true] %s224
      %227 = dma.vmem_to_hbm [thread:$0]  %s225, 32, %s2, [#allocation4]
    $region21: #{classification_head.1} parent=1 // pred_fallthru
      _
    // Predicated region
    $region22: #{classification_head.1} parent=1 // pred_check
      _
    $region23: #{classification_head.1} parent=1 // pred_check_branch
      %229 = sbr.rel (0) target = $region25
    $region24: #{classification_head.1} parent=1 // pred_region
      %230 = dma.done [#allocation4], 32
    $region25: #{classification_head.1} parent=1 // pred_fallthru
      _
    %231 = vsyncpa [#allocation3], 1
    %232 = vsyncpa [#allocation6], 1
    %233 = vsyncpa [#allocation4], 1

</llo_original>
